<compile_context>
chip_gen: v7x
topology: tpu7x:2x2x1
jax: 0.10.0
libtpu: 0.0.40
codegen_flags: <defaults>
</compile_context>

<pallas_src>
import functools
import math

import jax
import jax.numpy as jnp
from jax import lax
from jax.experimental import pallas as pl
from jax.experimental.pallas import tpu as pltpu


def _cdiv(a, b):
    return -(-a // b)


def _round_up(a, b):
    return _cdiv(a, b) * b


def _rmsnorm_kernel(x_ref, w_ref, o_ref, *, eps, scale_in_input_dtype):
    # x_ref: (tile_rows, H) input dtype; w_ref: (1, H) weight dtype (constant block);
    # o_ref: (tile_rows, H) output dtype.
    x = x_ref[...]
    x32 = x.astype(jnp.float32)
    var = jnp.mean(x32 * x32, axis=-1, keepdims=True)   # f32 accumulation (XLU reduce)
    inv = lax.rsqrt(var + eps)                           # EUP
    if scale_in_input_dtype:
        # v6e/v7x, 16-bit activations: scale + weight multiply in input dtype
        # (packed 2/lane on the VPU; also matches HF-Llama's dtype behavior).
        y = (x * inv.astype(x.dtype)) * w_ref[...].astype(x.dtype)
    else:
        # all-f32 path (v5e has no bf16 VALUs; also used for f32 activations).
        y = (x32 * inv) * w_ref[...].astype(jnp.float32)
    o_ref[...] = y.astype(o_ref.dtype)


def _tpu_generation():
    """Best-effort (generation, physical VMEM bytes) query."""
    kind = ""
    try:
        kind = jax.devices()[0].device_kind.lower()
    except Exception:
        pass
    vmem = None
    try:
        vmem = int(pltpu.get_tpu_info().vmem_capacity_bytes)
    except Exception:
        vmem = None
    if "v7" in kind or "7x" in kind:
        return "v7x", vmem
    if "v6" in kind:
        return "v6e", vmem
    if "v5" in kind:
        return "v5e", vmem
    return "unknown", vmem


def _rmsnorm_xla(x, weight, eps, out_dtype):
    x32 = x.astype(jnp.float32)
    var = jnp.mean(x32 * x32, axis=-1, keepdims=True)
    y = weight.astype(jnp.float32) * (x32 * lax.rsqrt(var + eps))
    return y.astype(out_dtype)


def rmsnorm(x, weight, eps=1e-6, *, out_dtype=None, tile_rows=None,
            vmem_limit_bytes=None):
    """RMSNorm over the last axis.  x: (..., H), weight: (H,)."""
    orig_shape = x.shape
    H = orig_shape[-1]
    rows = int(math.prod(orig_shape[:-1]))
    if out_dtype is None:
        out_dtype = x.dtype                      # no f32 promotion of bf16 activations

    # Tiny / narrow problems: plain XLA beats launch + masked-store overhead.
    if H < 128 or rows == 0 or rows * H < 1024:
        return _rmsnorm_xla(x, weight, eps, out_dtype).reshape(orig_shape)

    gen, vmem_capacity = _tpu_generation()

    x2d = x.reshape(rows, H)
    w2d = weight.reshape(1, H)                   # native dtype; cast inside the kernel

    in_bytes = jnp.dtype(x.dtype).itemsize
    out_bytes = jnp.dtype(out_dtype).itemsize
    w_bytes = jnp.dtype(weight.dtype).itemsize
    # sublane packing: f32 -> 8 rows, bf16/f16 -> 16, int8/fp8 -> 32
    sublane = max(8, 32 // min(in_bytes, out_bytes))
    rows_up = _round_up(rows, sublane)

    # Per-generation VMEM policy.
    if gen in ("v5e", "v6e"):
        target_pair_bytes = 40 * 1024 * 1024     # one in-tile + one out-tile
        vmem_cap = 96 * 1024 * 1024              # 128 MiB physical -> plenty of headroom
    else:                                        # v7x (64 MiB physical) and unknown
        target_pair_bytes = 12 * 1024 * 1024
        vmem_cap = 48 * 1024 * 1024
    if vmem_capacity is not None:
        vmem_cap = min(vmem_cap, int(vmem_capacity * 0.75))   # never request full VMEM

    per_row = H * (in_bytes + out_bytes)
    if tile_rows is None:
        tr = max(sublane, min(4096, target_pair_bytes // max(1, per_row)))
    else:
        tr = tile_rows
    tr = max(sublane, (tr // sublane) * sublane)
    tr = min(tr, rows_up)

    # Megacore balancing: only v7x has 2 TensorCores. Aim for >=4 steps so the
    # partial last block doesn't land entirely on one core; v5e/v6e keep the
    # largest possible tile (single TC -> fewer grid steps is strictly better).
    if gen == "v7x":
        while _cdiv(rows, tr) < 4 and tr > sublane:
            tr = max(sublane, ((tr // 2) // sublane) * sublane)
        steps = _cdiv(rows, tr)
        if steps > 1 and steps % 2 == 1:
            # One-shot heuristic: try an even step count so both TCs get equal work.
            tr_even = max(sublane, _round_up(_cdiv(rows, steps + 1), sublane))
            if _cdiv(rows, tr_even) % 2 == 0:
                tr = tr_even

    grid_steps = _cdiv(rows, tr)
    grid = (grid_steps,)                         # partial last block is masked

    # Triple-buffer the streaming input on v7x (3.2 TB/s HBM) when it can help.
    use_triple = (gen == "v7x") and grid_steps >= 3
    x_spec_kwargs = {"pipeline_mode": pl.Buffered(3)} if use_triple else {}
    in_bufs = 3 if use_triple else 2

    if vmem_limit_bytes is None:
        needed = tr * H * (in_bufs * in_bytes + 2 * out_bytes) + 2 * H * w_bytes + (2 << 20)
        vmem_limit_bytes = int(min(vmem_cap, max(32 * 1024 * 1024, needed)))

    # bf16/f16 scaling path only where the VPU has native 16-bit ALUs (v6e/v7x).
    scale_in_input_dtype = gen in ("v6e", "v7x") and jnp.dtype(x.dtype) in (
        jnp.dtype(jnp.bfloat16), jnp.dtype(jnp.float16))

    kernel = functools.partial(_rmsnorm_kernel, eps=eps,
                               scale_in_input_dtype=scale_in_input_dtype)

    cost = pl.CostEstimate(
        flops=4 * rows * H,
        transcendentals=rows,
        bytes_accessed=rows * H * (in_bytes + out_bytes) + H * w_bytes,
    )

    out = pl.pallas_call(
        kernel,
        out_shape=jax.ShapeDtypeStruct((rows, H), out_dtype),
        grid_spec=pltpu.PrefetchScalarGridSpec(
            num_scalar_prefetch=0,
            grid=grid,
            in_specs=[
                pl.BlockSpec((tr, H), lambda i: (i, 0), **x_spec_kwargs),  # lane-dense row tile
                pl.BlockSpec((1, H), lambda i: (0, 0)),                    # weight, constant block
            ],
            out_specs=pl.BlockSpec((tr, H), lambda i: (i, 0)),
        ),
        compiler_params=pltpu.CompilerParams(
            dimension_semantics=("parallel",),
            vmem_limit_bytes=vmem_limit_bytes,
        ),
        cost_estimate=cost,
    )(x2d, w2d)

    return out.reshape(orig_shape[:-1] + (H,))


def rmsnorm_ref(x, weight, eps=1e-6, out_dtype=None):
    if out_dtype is None:
        out_dtype = x.dtype
    x32 = x.astype(jnp.float32)
    var = jnp.mean(x32 * x32, axis=-1, keepdims=True)
    y = weight.astype(jnp.float32) * (x32 * lax.rsqrt(var + eps))
    return y.astype(out_dtype)


if __name__ == "__main__":
    key = jax.random.PRNGKey(0)
    batch, seq, hidden = 2, 8, 256
    x = jax.random.normal(key, (batch, seq, hidden), dtype=jnp.float32)
    # nn.Parameter(torch.ones(hidden_size)) -> deterministic ones
    weight = jnp.ones((hidden,), dtype=jnp.float32)

    y = jax.block_until_ready(rmsnorm(x, weight, eps=1e-6))
    y_ref = rmsnorm_ref(x, weight, eps=1e-6)
    assert y.shape == x.shape and y.dtype == x.dtype
    assert jnp.allclose(y, y_ref, atol=1e-5, rtol=1e-5)

    # Row count not a multiple of sublane/tile: exercises the masked partial block.
    x2 = jax.random.normal(jax.random.PRNGKey(1), (3, 5, hidden), dtype=jnp.float32)
    y2 = jax.block_until_ready(rmsnorm(x2, weight, eps=1e-6))
    assert jnp.allclose(y2, rmsnorm_ref(x2, weight, eps=1e-6), atol=1e-5, rtol=1e-5)

    # bf16 activations: f32 reduce, input-dtype scaling on v6e/v7x, bf16 output.
    xb = jax.random.normal(jax.random.PRNGKey(2), (4, 16, hidden), dtype=jnp.bfloat16)
    yb = jax.block_until_ready(rmsnorm(xb, weight, eps=1e-6))
    assert yb.dtype == jnp.bfloat16 and yb.shape == xb.shape
    yb_ref = rmsnorm_ref(xb, weight, eps=1e-6)
    assert jnp.allclose(yb.astype(jnp.float32), yb_ref.astype(jnp.float32),
                        atol=3e-2, rtol=3e-2)

    # H < 128 -> XLA fast-path fallback (kernel would waste most of each vreg).
    xs = jax.random.normal(jax.random.PRNGKey(3), (2, 8, 32), dtype=jnp.float32)
    ws = jnp.ones((32,), dtype=jnp.float32)
    ys = jax.block_until_ready(rmsnorm(xs, ws, eps=1e-6))
    assert jnp.allclose(ys, rmsnorm_ref(xs, ws, eps=1e-6), atol=1e-5, rtol=1e-5)

    print("KERNEL_OK")
</pallas_src>

<mosaic_0001>
module attributes {stable_mosaic.version = 11 : i64} {
  func.func @_rmsnorm_kernel(%arg0: i32, %arg1: memref<16x256xf32, #tpu.memory_space<vmem>>, %arg2: memref<1x256xf32, #tpu.memory_space<vmem>>, %arg3: memref<16x256xf32, #tpu.memory_space<vmem>>) attributes {dimension_semantics = [#tpu.dimension_semantics<parallel>], iteration_bounds = array<i64: 1>, scalar_prefetch = 0 : i64, scratch_operands = 0 : i64, tpu.core_type = #tpu.core_type<tc>, window_params = [{transform_indices = @transform_0, window_bounds = array<i64: 16, 256>}, {pipeline_mode = #tpu.pipeline_mode<synchronous>, transform_indices = @transform_1, window_bounds = array<i64: 1, 256>}, {transform_indices = @transform_2, window_bounds = array<i64: 16, 256>}]} {
    %c0 = arith.constant 0 : index
    %c0_0 = arith.constant 0 : index
    %0 = vector.load %arg1[%c0, %c0_0] : memref<16x256xf32, #tpu.memory_space<vmem>>, vector<16x256xf32>
    %1 = arith.mulf %0, %0 : vector<16x256xf32>
    %cst = arith.constant dense<0.000000e+00> : vector<16xf32>
    %2 = vector.multi_reduction <add>, %1, %cst [1] : vector<16x256xf32> to vector<16xf32>
    %3 = vector.shape_cast %2 : vector<16xf32> to vector<16x1xf32>
    %cst_1 = arith.constant 2.560000e+02 : f32
    %4 = vector.broadcast %cst_1 : f32 to vector<16x1xf32>
    %5 = arith.divf %3, %4 : vector<16x1xf32>
    %cst_2 = arith.constant 9.99999997E-7 : f32
    %6 = vector.broadcast %cst_2 : f32 to vector<16x1xf32>
    %7 = arith.addf %5, %6 : vector<16x1xf32>
    %8 = math.rsqrt %7 : vector<16x1xf32>
    %9 = vector.broadcast %8 : vector<16x1xf32> to vector<16x256xf32>
    %10 = arith.mulf %0, %9 : vector<16x256xf32>
    %c0_3 = arith.constant 0 : index
    %c0_4 = arith.constant 0 : index
    %11 = vector.load %arg2[%c0_3, %c0_4] : memref<1x256xf32, #tpu.memory_space<vmem>>, vector<1x256xf32>
    %12 = vector.broadcast %11 : vector<1x256xf32> to vector<16x256xf32>
    %13 = arith.mulf %10, %12 : vector<16x256xf32>
    %c0_5 = arith.constant 0 : index
    %c0_6 = arith.constant 0 : index
    %14 = vector.load %arg3[%c0_5, %c0_6] : memref<16x256xf32, #tpu.memory_space<vmem>>, vector<16x256xf32>
    tpu.vector_store %arg3[%c0_5, %c0_6], %13 {strides = array<i32>} : memref<16x256xf32, #tpu.memory_space<vmem>>, vector<16x256xf32>,
    return
  }
  func.func @transform_0(%arg0: i32) -> (i32, i32) {
    %c0_i32 = arith.constant 0 : i32
    %c0_i32_0 = arith.constant 0 : i32
    return %arg0, %c0_i32 : i32, i32
  }
  func.func @transform_1(%arg0: i32) -> (i32, i32) {
    %c0_i32 = arith.constant 0 : i32
    %c0_i32_0 = arith.constant 0 : i32
    %c0_i32_1 = arith.constant 0 : i32
    return %c0_i32, %c0_i32_0 : i32, i32
  }
  func.func @transform_2(%arg0: i32) -> (i32, i32) {
    %c0_i32 = arith.constant 0 : i32
    %c0_i32_0 = arith.constant 0 : i32
    return %arg0, %c0_i32 : i32, i32
  }
}

</mosaic_0001>

<llo_original>
// kernel: tpu_custom_call.1
$region0: #{tpu_custom_call.1}
  #allocation0 [shape = 'u32[]', space=smem, size = 0x4, offset = 0x4, fixed_abs, tag = 'smem constant byte address 0x4 - core index']
  #allocation1 [shape = 'u32[144,128]{1,0:T(1,128)}', space=vmem, size = 0x12000, scoped, tag = 'internal scratch']
  %s0 = inlined_call_operand.hbm [shape: f32[16,256], index: 0, kind: input, shape index: {}]
  %s1 = inlined_call_operand.vmem [shape: f32[1,256], index: 1, kind: input, shape index: {}]
  %s2 = inlined_call_operand.hbm [shape: f32[16,256], index: 2, kind: output, shape index: {}]
  %s3 = sld [smem:[#allocation0]]
  $region22: #{tpu_custom_call.1} parent=0
    _
  %s5 = ssub.s32 1, %s3
  %s6 = scalar_select 0, %s5, %s3
  $region1: #{tpu_custom_call.1} parent=0
    #allocation2 [shape = 'u8[16384]{0}', space=vmem, size = 0x4000, scoped, tag = 'input window, operand 0, single buffered']
    #allocation3 [shape = 's32[1]{0}', space=sflag, size = 0x4, scoped, tag = 'scoped memory for tpu_custom_call.1']
    #allocation4 [shape = 's32[1]{0}', space=sflag, size = 0x4, scoped, tag = 'scoped memory for tpu_custom_call.1']
    #allocation5 [shape = 'u8[16384]{0}', space=vmem, size = 0x4000, scoped, tag = 'output window, operand 0, single buffered']
    %7 = vsyncpa [#allocation3], 0
    %8 = vsyncpa [#allocation4], 0
    // Predicated region
    $region2: #{tpu_custom_call.1} parent=1 // pred_check
      _
    $region3: #{tpu_custom_call.1} parent=1 // pred_check_branch
      %10 = sbr.rel (0) target = $region5
    $region4: #{tpu_custom_call.1} parent=1 // pred_region
      %s12 = ssub.s32 512, 512
      %13 = vsyncadd [#allocation3], %s12
      %s14 = sshll.u32 [#allocation2], 4
      %s15 = int_to_ptr.vmem [resolvable:$true] %s14
      %20 = dma.hbm_to_vmem [thread:$0]  %s0, 512, %s15, [#allocation3], 256, 256, 16
    $region5: #{tpu_custom_call.1} parent=1 // pred_fallthru
      _
    // Predicated region
    $region6: #{tpu_custom_call.1} parent=1 // pred_check
      _
    $region7: #{tpu_custom_call.1} parent=1 // pred_check_branch
      %22 = sbr.rel (0) target = $region9
    $region8: #{tpu_custom_call.1} parent=1 // pred_region
      _
    $region9: #{tpu_custom_call.1} parent=1 // pred_fallthru
      _
    // Predicated region
    $region10: #{tpu_custom_call.1} parent=1 // pred_check
      _
    $region11: #{tpu_custom_call.1} parent=1 // pred_check_branch
      %24 = sbr.rel (0) target = $region13
    $region12: #{tpu_custom_call.1} parent=1 // pred_region
      %25 = dma.done [#allocation3], 512
    $region13: #{tpu_custom_call.1} parent=1 // pred_fallthru
      _
    %v26 = vld [vmem:[#allocation2] sm:$0xff]
    %v27 = vld [vmem:[#allocation2 + $0x8] sm:$0xff]
    %v28 = vld [vmem:[#allocation2 + $0x10] sm:$0xff]
    %v29 = vld [vmem:[#allocation2 + $0x18] sm:$0xff]
    %v30 = vmul.f32 %v26, %v26
    %v31 = vmul.f32 %v27, %v27
    %v32 = vmul.f32 %v28, %v28
    %v33 = vmul.f32 %v29, %v29
    %v34 = vadd.f32 %v30, %v31
    %35 = vadd.xlane.f32.xlu0 %v34
    %v36 = vpop.xlane.xlu0 %35
    %v37 = vadd.f32 %v32, %v33
    %38 = vadd.xlane.f32.xlu0 %v37
    %v39 = vpop.xlane.xlu0 %38
    %v40 = vrcp.pop 256.0
    %v41 = vmul.f32 %v36, %v40
    %v42 = vmul.f32 %v39, %v40
    %v43 = vadd.f32 %v41, 1e-06
    %v44 = vadd.f32 %v42, 1e-06
    %v45 = vrsqrt.pop %v43
    %v46 = vrsqrt.pop %v44
    %v47 = vmul.f32 %v26, %v45
    %v48 = vmul.f32 %v27, %v45
    %v49 = vmul.f32 %v28, %v46
    %v50 = vmul.f32 %v29, %v46
    %v51 = vld [vmem:[%s1] sm:$0x3]
    %v53 = vlaneseq
    %v54 = vshrl.u32 %v53, 7
    %v55 = vsub.s32 0, %v54
    %v56 = vrot.slane %v51, %v55
    %v57 = vlaneseq
    %v58 = vshrl.u32 %v57, 7
    %v59 = vsub.s32 1, %v58
    %v60 = vrot.slane %v51, %v59
    %v63 = vmul.f32 %v47, %v56
    %v64 = vmul.f32 %v48, %v60
    %v65 = vmul.f32 %v49, %v56
    %v66 = vmul.f32 %v50, %v60
    %67 = vst [vmem:[#allocation5] sm:$0xff] %v63
    %68 = vst [vmem:[#allocation5 + $0x8] sm:$0xff] %v64
    %69 = vst [vmem:[#allocation5 + $0x10] sm:$0xff] %v65
    %70 = vst [vmem:[#allocation5 + $0x18] sm:$0xff] %v66
    // Predicated region
    $region14: #{tpu_custom_call.1} parent=1 // pred_check
      _
    $region15: #{tpu_custom_call.1} parent=1 // pred_check_branch
      %72 = sbr.rel (0) target = $region17
    $region16: #{tpu_custom_call.1} parent=1 // pred_region
      %s74 = ssub.s32 512, 512
      %75 = vsyncadd [#allocation4], %s74
      %s76 = sshll.u32 [#allocation5], 4
      %s77 = int_to_ptr.vmem [resolvable:$true] %s76
      %82 = dma.vmem_to_hbm [thread:$0]  %s77, 512, %s2, [#allocation4], 256, 256, 16
    $region17: #{tpu_custom_call.1} parent=1 // pred_fallthru
      _
    // Predicated region
    $region18: #{tpu_custom_call.1} parent=1 // pred_check
      _
    $region19: #{tpu_custom_call.1} parent=1 // pred_check_branch
      %84 = sbr.rel (0) target = $region21
    $region20: #{tpu_custom_call.1} parent=1 // pred_region
      %85 = dma.done [#allocation4], 512
    $region21: #{tpu_custom_call.1} parent=1 // pred_fallthru
      _
    %86 = vsyncpa [#allocation3], 1
    %87 = vsyncpa [#allocation4], 1

</llo_original>
